<compile_context>
chip_gen: v5e
topology: v5e:2x2
jax: 0.10.0
libtpu: 0.0.40
codegen_flags: <defaults>
</compile_context>

<pallas_src>
import functools

import jax
import jax.numpy as jnp
from jax.experimental import pallas as pl
from jax.experimental.pallas import tpu as pltpu

IGNORE_INDEX = -100          # PyTorch nn.CrossEntropyLoss default
_NEG_LARGE = -1.0e30         # finite stand-in for -inf (avoids inf-inf NaNs)


# ---------------------------------------------------------------------------
# hardware-aware helpers
# ---------------------------------------------------------------------------
def _round_up(x, m):
    return ((x + m - 1) // m) * m


def _nbytes(shape, dtype):
    n = 1
    for d in shape:
        n *= int(d)
    return n * jnp.dtype(dtype).itemsize


def _device_kind():
    try:
        return jax.devices()[0].device_kind.lower()
    except Exception:  # pragma: no cover - defensive
        return ""


def _vmem_cap_bytes():
    """Scoped-VMEM ceiling: physical VMEM minus headroom (64 MiB on v7x!)."""
    try:
        info = pltpu.get_tpu_info()
        phys = int(getattr(info, "vmem_capacity_bytes", 0) or 0)
        if phys > 0:
            return max(32 << 20, phys - (16 << 20))
    except Exception:
        pass
    kind = _device_kind()
    if "v7" in kind:
        return 48 << 20          # 64 MiB part: never ask for all of it
    return 96 << 20              # v5e / v6e have 128 MiB physical


def _vmem_limit_bytes(blocks, scratch=()):
    """Explicit scoped-VMEM budget: double-buffered blocks + scratch + headroom."""
    need = sum(2 * _nbytes(s, d) for s, d in blocks)
    need += sum(_nbytes(s, d) for s, d in scratch)
    need += 4 << 20
    return int(min(max(need, 32 << 20), _vmem_cap_bytes()))


def _fused_defaults():
    kind = _device_kind()
    if "v7" in kind:
        return 512, 512          # ~341 FLOPs/byte of weight > ~310 needed; fits 64 MiB
    if "v5" in kind:
        return 256, 512          # v5e only needs ~240 FLOPs/byte; keep small tiles
    return 1024, 512             # v6e: ~650 FLOPs/byte needed -> tm >= 512


def _ce_defaults():
    kind = _device_kind()
    if "v7" in kind:
        return 256, 2048         # >= 2 MiB streamed f32 block amortises step overhead
    return 256, 1024


def _matmul_defaults():
    kind = _device_kind()
    if "v5" in kind:
        return 256, 512, 512
    return 512, 1024, 512        # v6e / v7x: keeps the matmul MXU-bound, fits 64 MiB


def _choose_token_tile(n, requested):
    """Sublane/MXU-friendly token tile: multiple of 256 when possible, min 16."""
    t = min(requested, _round_up(n, 16))
    if t >= 256:
        t = (t // 256) * 256
    else:
        t = max((t // 16) * 16, 16)
    return t


def _choose_vocab_tile(v, requested):
    """Lane-aligned (multiple-of-128) vocab tile; ragged last tile is masked
    inside the kernel (no fallback to a single full-V tile)."""
    if v <= 128:
        return v                 # full-dim block is always legal
    return _round_up(min(requested, v), 128)


def _choose_hidden_tile(h, requested):
    """Contraction (H) tile for the fused kernel.  Full H unless explicitly
    tiled or H is very large (keeps the (H, tv) weight block within v7x VMEM)."""
    if requested and requested < h and h % requested == 0:
        return requested
    if h > 8192 and h % 2048 == 0:
        return 2048
    return h


def _shift_targets(labels, input_attention_mask=None):
    """Shift labels (not logits): targets[..., t] = labels[..., t+1]; last
    position and masked positions become IGNORE_INDEX.  Equivalent to the
    PyTorch shift_logits/shift_labels formulation but avoids materialising a
    second HBM copy of the [B, S, V] logits tensor."""
    labels = labels.astype(jnp.int32)
    tgt = labels[..., 1:]
    if input_attention_mask is not None:
        tgt = jnp.where(input_attention_mask[..., 1:] != 0, tgt, IGNORE_INDEX)
    pad = jnp.full(labels.shape[:-1] + (1,), IGNORE_INDEX, jnp.int32)
    return jnp.concatenate([tgt, pad], axis=-1)


def _pad_targets_2d(targets1d, n_pad):
    tgt = targets1d.astype(jnp.int32)
    n = tgt.shape[0]
    if n_pad > n:
        tgt = jnp.concatenate([tgt, jnp.full((n_pad - n,), IGNORE_INDEX, jnp.int32)])
    return tgt.reshape(n_pad, 1)


# ---------------------------------------------------------------------------
# shared online-softmax cross-entropy body (flash-attention style over vocab)
# ---------------------------------------------------------------------------
def _init_ce_scratch(m_sc, l_sc, p_sc):
    m_sc[...] = jnp.full(m_sc.shape, _NEG_LARGE, m_sc.dtype)
    l_sc[...] = jnp.zeros(l_sc.shape, l_sc.dtype)
    p_sc[...] = jnp.zeros(p_sc.shape, p_sc.dtype)


def _online_ce_step(logits, labels, j, nv, v_total, out_ref, m_sc, l_sc, p_sc,
                    *, mask_rows):
    """One vocab-tile step of online-softmax cross entropy.

    logits: [tm, tv] f32; labels: [tm, 1] i32.  Accumulates running max /
    sum-exp / picked-logit; on the last vocab tile reduces to a lane-dense
    (8, 128) partial [loss_sum, valid_count] block.

    mask_rows (static): True when the token grid has a ragged last tile, i.e.
    rows past the real array may be garbage.  Those rows carry IGNORE_INDEX
    targets; zeroing their logits keeps every intermediate finite.
    """
    tm, tv = logits.shape
    # (1, tv) iota: sublane-broadcast; reused for ragged-vocab mask + label gather.
    col = jax.lax.broadcasted_iota(jnp.int32, (1, tv), 1) + j * tv
    valid = labels != IGNORE_INDEX                       # [tm, 1]

    if mask_rows:                       # static: only when n % tm != 0
        logits = jnp.where(valid, logits, 0.0)
    if v_total % tv != 0:               # static: only a ragged last vocab tile
        logits = jnp.where(col < v_total, logits, _NEG_LARGE)

    m_prev = m_sc[...]
    m_new = jnp.maximum(m_prev, jnp.max(logits, axis=-1, keepdims=True))
    l_sc[...] = jnp.exp(m_prev - m_new) * l_sc[...] + jnp.sum(
        jnp.exp(logits - m_new), axis=-1, keepdims=True)
    m_sc[...] = m_new
    # the label's column appears in at most one vocab tile, so += is a gather
    p_sc[...] += jnp.sum(jnp.where(col == labels, logits, 0.0),
                         axis=-1, keepdims=True)

    @pl.when(j == nv - 1)
    def _finalize():
        lse = m_sc[...] + jnp.log(l_sc[...])
        per_tok = jnp.where(valid, lse - p_sc[...], 0.0)         # [tm, 1]
        loss_sum = jnp.sum(per_tok)
        count = jnp.sum(valid.astype(jnp.float32))               # exact: <= tm
        # lane-dense partial block: [0, 0] = sum of losses, [0, 1] = valid count
        r = jax.lax.broadcasted_iota(jnp.int32, (8, 128), 0)
        c = jax.lax.broadcasted_iota(jnp.int32, (8, 128), 1)
        out_ref[0] = jnp.where((r == 0) & (c == 0), loss_sum,
                               jnp.where((r == 0) & (c == 1), count, 0.0))


def _ce_from_logits_kernel(logits_ref, tgt_ref, out_ref, m_sc, l_sc, p_sc, *,
                           v_total, mask_rows):
    j = pl.program_id(1)

    @pl.when(j == 0)
    def _():
        _init_ce_scratch(m_sc, l_sc, p_sc)

    _online_ce_step(logits_ref[...].astype(jnp.float32), tgt_ref[...], j,
                    pl.num_programs(1), v_total, out_ref, m_sc, l_sc, p_sc,
                    mask_rows=mask_rows)


def _fused_linear_ce_kernel(h_ref, w_ref, tgt_ref, out_ref, *scratch,
                            v_total, nk, mask_rows):
    """Fused hidden @ W -> online-softmax CE.  Logit tiles live only in
    VMEM/vregs; the [N, V] logits never touch HBM.  When nk > 1 the H
    contraction is tiled (grid axis 2) into an f32 VMEM accumulator."""
    j = pl.program_id(1)
    k = pl.program_id(2)
    nv = pl.num_programs(1)
    if nk == 1:
        m_sc, l_sc, p_sc = scratch
    else:
        acc_sc, m_sc, l_sc, p_sc = scratch

    @pl.when((j == 0) & (k == 0))
    def _():
        _init_ce_scratch(m_sc, l_sc, p_sc)

    part = jnp.dot(h_ref[...], w_ref[...], preferred_element_type=jnp.float32)

    if nk == 1:
        # full-H contraction: feed the MXU result straight into the CE step
        _online_ce_step(part, tgt_ref[...], j, nv, v_total, out_ref,
                        m_sc, l_sc, p_sc, mask_rows=mask_rows)
    else:
        @pl.when(k == 0)
        def _():
            acc_sc[...] = part

        @pl.when(k > 0)
        def _():
            acc_sc[...] += part

        @pl.when(k == nk - 1)
        def _():
            _online_ce_step(acc_sc[...], tgt_ref[...], j, nv, v_total, out_ref,
                            m_sc, l_sc, p_sc, mask_rows=mask_rows)


# ---------------------------------------------------------------------------
# wrappers
# ---------------------------------------------------------------------------
def clm_cross_entropy(logits2d, targets1d, *, block_m=None, block_v=None):
    """Mean CE over non-ignored targets.  logits2d: [N, V] (f32/bf16); targets1d: [N] i32."""
    n, v = logits2d.shape
    dbm, dbv = _ce_defaults()
    tm = _choose_token_tile(n, block_m or dbm)
    tv = _choose_vocab_tile(v, block_v or dbv)
    nt, nv = pl.cdiv(n, tm), pl.cdiv(v, tv)
    tgt = _pad_targets_2d(targets1d, nt * tm)   # padded rows are IGNORE_INDEX

    blocks = [((tm, tv), logits2d.dtype), ((tm, 1), jnp.int32),
              ((1, 8, 128), jnp.float32)]
    scratch = [((tm, 1), jnp.float32)] * 3
    partials = pl.pallas_call(
        functools.partial(_ce_from_logits_kernel, v_total=v,
                          mask_rows=(n % tm != 0)),
        out_shape=jax.ShapeDtypeStruct((nt, 8, 128), jnp.float32),
        grid_spec=pltpu.PrefetchScalarGridSpec(
            num_scalar_prefetch=0,
            grid=(nt, nv),                                # vocab reduction axis last
            in_specs=[
                pl.BlockSpec((tm, tv), lambda i, j: (i, j)),
                pl.BlockSpec((tm, 1), lambda i, j: (i, 0)),
            ],
            out_specs=pl.BlockSpec((1, 8, 128), lambda i, j: (i, 0, 0)),
            scratch_shapes=[pltpu.VMEM((tm, 1), jnp.float32)] * 3,
        ),
        compiler_params=pltpu.CompilerParams(
            dimension_semantics=("parallel", "arbitrary"),
            vmem_limit_bytes=_vmem_limit_bytes(blocks, scratch),
        ),
    )(logits2d, tgt)
    loss_sum = jnp.sum(partials[:, 0, 0])
    count = jnp.sum(partials[:, 0, 1].astype(jnp.int32))   # exact integer count
    # 0/0 -> NaN intentionally matches PyTorch CrossEntropyLoss on all-ignored input
    return loss_sum / count.astype(jnp.float32)


def fused_linear_clm_loss(hidden2d, lm_head_w, targets1d, *,
                          block_m=None, block_v=None, block_h=None):
    """Fused hidden @ W -> online-softmax CE; the [N, V] logits never touch HBM."""
    n, h = hidden2d.shape
    h2, v = lm_head_w.shape
    assert h == h2
    if hidden2d.dtype != jnp.bfloat16:
        hidden2d = hidden2d.astype(jnp.bfloat16)
    if lm_head_w.dtype != jnp.bfloat16:          # adapter caches a bf16 copy to avoid this
        lm_head_w = lm_head_w.astype(jnp.bfloat16)

    dbm, dbv = _fused_defaults()
    tm = _choose_token_tile(n, block_m or dbm)
    tv = _choose_vocab_tile(v, block_v or dbv)
    tk = _choose_hidden_tile(h, block_h)
    nt, nv, nk = pl.cdiv(n, tm), pl.cdiv(v, tv), h // tk
    tgt = _pad_targets_2d(targets1d, nt * tm)

    blocks = [((tm, tk), jnp.bfloat16), ((tk, tv), jnp.bfloat16),
              ((tm, 1), jnp.int32), ((1, 8, 128), jnp.float32)]
    scratch = []
    scratch_shapes = []
    if nk > 1:
        scratch.append(((tm, tv), jnp.float32))
        scratch_shapes.append(pltpu.VMEM((tm, tv), jnp.float32))
    scratch += [((tm, 1), jnp.float32)] * 3
    scratch_shapes += [pltpu.VMEM((tm, 1), jnp.float32)] * 3

    partials = pl.pallas_call(
        functools.partial(_fused_linear_ce_kernel, v_total=v, nk=nk,
                          mask_rows=(n % tm != 0)),
        out_shape=jax.ShapeDtypeStruct((nt, 8, 128), jnp.float32),
        grid_spec=pltpu.PrefetchScalarGridSpec(
            num_scalar_prefetch=0,
            grid=(nt, nv, nk),                  # vocab then H contraction (innermost)
            in_specs=[
                pl.BlockSpec((tm, tk), lambda i, j, k: (i, k)),
                # TODO(synk): sweep pipeline_mode=pl.Buffered(3) on this weight
                # spec once per-step DMA time approaches the MXU step time.
                pl.BlockSpec((tk, tv), lambda i, j, k: (k, j)),
                pl.BlockSpec((tm, 1), lambda i, j, k: (i, 0)),
            ],
            out_specs=pl.BlockSpec((1, 8, 128), lambda i, j, k: (i, 0, 0)),
            scratch_shapes=scratch_shapes,
        ),
        compiler_params=pltpu.CompilerParams(
            dimension_semantics=("parallel", "arbitrary", "arbitrary"),
            vmem_limit_bytes=_vmem_limit_bytes(blocks, scratch),
        ),
    )(hidden2d, lm_head_w, tgt)
    loss_sum = jnp.sum(partials[:, 0, 0])
    count = jnp.sum(partials[:, 0, 1].astype(jnp.int32))
    return loss_sum / count.astype(jnp.float32)


# ---------------------------------------------------------------------------
# tiled matmul (used by the synthetic model_forward to materialise logits)
# ---------------------------------------------------------------------------
def _tiled_matmul_kernel(a_ref, b_ref, o_ref, acc_ref):
    @pl.when(pl.program_id(2) == 0)
    def _():
        acc_ref[...] = jnp.zeros(acc_ref.shape, acc_ref.dtype)

    acc_ref[...] += jnp.dot(a_ref[...], b_ref[...],
                            preferred_element_type=jnp.float32)

    @pl.when(pl.program_id(2) == pl.num_programs(2) - 1)
    def _():
        o_ref[...] = acc_ref[...].astype(o_ref.dtype)


def project_to_logits(hidden2d, lm_head_w, *, block_m=None, block_n=None,
                      block_k=None, out_dtype=jnp.bfloat16):
    """Tiled, pipelined hidden @ W -> logits (bf16 in/out, f32 accumulation)."""
    t, h = hidden2d.shape
    h2, v = lm_head_w.shape
    assert h == h2
    if hidden2d.dtype != jnp.bfloat16:
        hidden2d = hidden2d.astype(jnp.bfloat16)
    if lm_head_w.dtype != jnp.bfloat16:
        lm_head_w = lm_head_w.astype(jnp.bfloat16)

    dbm, dbn, dbk = _matmul_defaults()
    tm = _choose_token_tile(t, block_m or dbm)
    tn = _choose_vocab_tile(v, block_n or dbn)
    bk = block_k or dbk
    tk = bk if (bk < h and h % bk == 0) else h   # K tiles must cover H exactly

    blocks = [((tm, tk), jnp.bfloat16), ((tk, tn), jnp.bfloat16),
              ((tm, tn), out_dtype)]
    scratch = [((tm, tn), jnp.float32)]
    return pl.pallas_call(
        _tiled_matmul_kernel,
        out_shape=jax.ShapeDtypeStruct((t, v), out_dtype),
        grid_spec=pltpu.PrefetchScalarGridSpec(
            num_scalar_prefetch=0,
            grid=(pl.cdiv(t, tm), pl.cdiv(v, tn), h // tk),
            in_specs=[
                pl.BlockSpec((tm, tk), lambda i, j, k: (i, k)),
                pl.BlockSpec((tk, tn), lambda i, j, k: (k, j)),
            ],
            out_specs=pl.BlockSpec((tm, tn), lambda i, j, k: (i, j)),
            scratch_shapes=[pltpu.VMEM((tm, tn), jnp.float32)],
        ),
        compiler_params=pltpu.CompilerParams(
            dimension_semantics=("parallel", "parallel", "arbitrary"),
            vmem_limit_bytes=_vmem_limit_bytes(blocks, scratch),
        ),
    )(hidden2d, lm_head_w)


# ---------------------------------------------------------------------------
# Adapter (mirrors CLMLossAdapter.forward / loss_func)
# ---------------------------------------------------------------------------
class CLMLossAdapter:
    """JAX/Pallas port of CLMLossAdapter (ignore_index=-100, reduction='mean')."""

    def __init__(self, model_forward, vocab_size, lm_head_weight=None,
                 block_m=None, block_v=None, block_h=None):
        self.model_forward = model_forward
        self.vocab_size = vocab_size
        # Cast the LM-head weight to bf16 ONCE: avoids an extra [H, V]
        # f32->bf16 HBM round-trip on every loss call.
        self.lm_head_weight = (None if lm_head_weight is None
                               else lm_head_weight.astype(jnp.bfloat16))
        self.block_m = block_m
        self.block_v = block_v
        self.block_h = block_h
        self.training = True
        # TODO(synk): arbitrary clm_loss_kwargs (class weights, label smoothing,
        # non-mean reductions) are not plumbed into the kernels; defaults only.

    @classmethod
    def use_and_patch_forward(cls, parent, config=None):
        config = config or parent.config
        instance = cls(parent._forward, vocab_size=config.vocab_size,
                       lm_head_weight=getattr(config, "lm_head_weight", None))
        parent._forward = instance
        return instance

    def loss_func(self, logits, labels, input_attention_mask=None):
        targets = _shift_targets(labels, input_attention_mask)
        v = logits.shape[-1]
        return clm_cross_entropy(logits.reshape(-1, v), targets.reshape(-1),
                                 block_m=self.block_m, block_v=self.block_v)

    def fused_loss_func(self, hidden_states, labels, input_attention_mask=None):
        targets = _shift_targets(labels, input_attention_mask)
        h = hidden_states.shape[-1]
        return fused_linear_clm_loss(hidden_states.reshape(-1, h),
                                     self.lm_head_weight, targets.reshape(-1),
                                     block_m=self.block_m, block_v=self.block_v,
                                     block_h=self.block_h)

    def __call__(self, **kwargs):
        outputs = self.model_forward(**kwargs)
        if self.training and "labels" in kwargs:
            # Prefer the fused path: the generic path writes N*V logits to HBM
            # and immediately re-reads them (~3x the loss-path HBM traffic).
            if self.lm_head_weight is not None and "hidden_states" in outputs:
                outputs["loss"] = self.fused_loss_func(outputs["hidden_states"],
                                                       kwargs["labels"])
            else:
                outputs["loss"] = self.loss_func(outputs["logits"],
                                                 kwargs["labels"])
        return outputs


# ---------------------------------------------------------------------------
if __name__ == "__main__":
    # Ragged-on-purpose toy shapes: N = 2*63 = 126 (ragged token tiles at tm=64),
    # V = 320 (ragged vocab tiles at tv=128), H = 256 with block_h=128 (nk=2).
    B, S, H, V = 2, 63, 256, 320
    BM, BV, BH = 64, 128, 128

    key = jax.random.PRNGKey(0)
    k_h, k_w, k_l, k_m = jax.random.split(key, 4)
    hidden = jax.random.normal(k_h, (B, S, H), dtype=jnp.float32)
    w_proj = jax.random.normal(k_w, (H, V), dtype=jnp.float32) * 0.05
    labels = jax.random.randint(k_l, (B, S), 0, V, dtype=jnp.int32)
    labels = labels.at[0, 5].set(IGNORE_INDEX).at[1, 37].set(IGNORE_INDEX)
    attn_mask = (jax.random.uniform(k_m, (B, S)) > 0.15).astype(jnp.int32)

    def synthetic_model_forward(**kwargs):
        h = kwargs["hidden_states"]
        b, s, d = h.shape
        logits2d = project_to_logits(h.reshape(b * s, d), w_proj,
                                     block_m=BM, block_n=BV, block_k=BH)
        return {"hidden_states": h, "logits": logits2d.reshape(b, s, V)}

    adapter = CLMLossAdapter(synthetic_model_forward, vocab_size=V,
                             lm_head_weight=w_proj, block_m=BM, block_v=BV,
                             block_h=BH)
    outputs = adapter(hidden_states=hidden, labels=labels)
    fused_loss = jax.block_until_ready(outputs["loss"])
    logits = outputs["logits"]

    # also exercise the materialized-logits CE kernel (generic adapter path)
    ce_loss = jax.block_until_ready(adapter.loss_func(logits, labels))
    masked_loss = jax.block_until_ready(adapter.loss_func(logits, labels, attn_mask))

    # ---------------- pure-JAX references ----------------
    h_bf = hidden.astype(jnp.bfloat16).astype(jnp.float32)
    w_bf = w_proj.astype(jnp.bfloat16).astype(jnp.float32)
    ref_logits = (h_bf.reshape(-1, H) @ w_bf).reshape(B, S, V)   # f32 accum of bf16 inputs

    def ref_shifted_ce(lg, lb, mask=None):
        sl = lg[:, :-1, :].reshape(-1, V).astype(jnp.float32)
        tl = lb[:, 1:].reshape(-1)
        if mask is not None:
            tl = jnp.where(mask[:, 1:].reshape(-1) != 0, tl, IGNORE_INDEX)
        valid = tl != IGNORE_INDEX
        logp = jax.nn.log_softmax(sl, axis=-1)
        nll = -jnp.take_along_axis(logp, jnp.clip(tl, 0, V - 1)[:, None],
                                   axis=-1)[:, 0]
        return jnp.sum(jnp.where(valid, nll, 0.0)) / jnp.sum(valid)

    assert jnp.allclose(logits.astype(jnp.float32), ref_logits,
                        rtol=2e-2, atol=2e-2), "logits mismatch"

    ref_fused = ref_shifted_ce(ref_logits, labels)
    assert jnp.allclose(fused_loss, ref_fused, rtol=1e-3, atol=1e-3), \
        (fused_loss, ref_fused)

    ref_ce = ref_shifted_ce(logits.astype(jnp.float32), labels)
    assert jnp.allclose(ce_loss, ref_ce, rtol=1e-3, atol=1e-3), (ce_loss, ref_ce)

    ref_masked = ref_shifted_ce(logits.astype(jnp.float32), labels, attn_mask)
    assert jnp.allclose(masked_loss, ref_masked, rtol=1e-3, atol=1e-3), \
        (masked_loss, ref_masked)

    print("KERNEL_OK")
</pallas_src>

<mosaic_0001>
module attributes {stable_mosaic.version = 11 : i64} {
  func.func @_tiled_matmul_kernel(%arg0: i32, %arg1: i32, %arg2: i32, %arg3: memref<64x128xbf16, #tpu.memory_space<vmem>>, %arg4: memref<128x128xbf16, #tpu.memory_space<vmem>>, %arg5: memref<64x128xbf16, #tpu.memory_space<vmem>>, %arg6: memref<64x128xf32, #tpu.memory_space<vmem>>) attributes {dimension_semantics = [#tpu.dimension_semantics<parallel>, #tpu.dimension_semantics<parallel>, #tpu.dimension_semantics<arbitrary>], iteration_bounds = array<i64: 2, 3, 2>, scalar_prefetch = 0 : i64, scratch_operands = 1 : i64, tpu.core_type = #tpu.core_type<tc>, window_params = [{transform_indices = @transform_0, window_bounds = array<i64: 64, 128>}, {transform_indices = @transform_1, window_bounds = array<i64: 128, 128>}, {transform_indices = @transform_2, window_bounds = array<i64: 64, 128>}]} {
    %c0_i32 = arith.constant 0 : i32
    %0 = arith.cmpi eq, %arg2, %c0_i32 : i32
    %1 = arith.extui %0 : i1 to i32
    %c0_i32_0 = arith.constant 0 : i32
    %2 = arith.cmpi ne, %1, %c0_i32_0 : i32
    scf.if %2 {
      %cst_9 = arith.constant 0.000000e+00 : f32
      %12 = vector.broadcast %cst_9 : f32 to vector<64x128xf32>
      %c0_10 = arith.constant 0 : index
      %c0_11 = arith.constant 0 : index
      %13 = vector.load %arg6[%c0_10, %c0_11] : memref<64x128xf32, #tpu.memory_space<vmem>>, vector<64x128xf32>
      tpu.vector_store %arg6[%c0_10, %c0_11], %12 {strides = array<i32>} : memref<64x128xf32, #tpu.memory_space<vmem>>, vector<64x128xf32>,
    } else {
    }
    %c0 = arith.constant 0 : index
    %c0_1 = arith.constant 0 : index
    %3 = vector.load %arg6[%c0, %c0_1] : memref<64x128xf32, #tpu.memory_space<vmem>>, vector<64x128xf32>
    %c0_2 = arith.constant 0 : index
    %c0_3 = arith.constant 0 : index
    %4 = vector.load %arg3[%c0_2, %c0_3] : memref<64x128xbf16, #tpu.memory_space<vmem>>, vector<64x128xbf16>
    %c0_4 = arith.constant 0 : index
    %c0_5 = arith.constant 0 : index
    %5 = vector.load %arg4[%c0_4, %c0_5] : memref<128x128xbf16, #tpu.memory_space<vmem>>, vector<128x128xbf16>
    %cst = arith.constant dense<0.000000e+00> : vector<64x128xf32>
    %6 = tpu.matmul %4, %5, %cst {dimension_numbers = #tpu.dot_dimension_numbers<[1], [0], [0], [1], [0, 0, 1, 1], [], []>} : vector<64x128xbf16>, vector<128x128xbf16>, vector<64x128xf32> -> vector<64x128xf32>
    %7 = arith.addf %3, %6 : vector<64x128xf32>
    %c0_6 = arith.constant 0 : index
    %c0_7 = arith.constant 0 : index
    %8 = vector.load %arg6[%c0_6, %c0_7] : memref<64x128xf32, #tpu.memory_space<vmem>>, vector<64x128xf32>
    tpu.vector_store %arg6[%c0_6, %c0_7], %7 {strides = array<i32>} : memref<64x128xf32, #tpu.memory_space<vmem>>, vector<64x128xf32>,
    %c1_i32 = arith.constant 1 : i32
    %9 = arith.cmpi eq, %arg2, %c1_i32 : i32
    %10 = arith.extui %9 : i1 to i32
    %c0_i32_8 = arith.constant 0 : i32
    %11 = arith.cmpi ne, %10, %c0_i32_8 : i32
    scf.if %11 {
      %c0_9 = arith.constant 0 : index
      %c0_10 = arith.constant 0 : index
      %12 = vector.load %arg6[%c0_9, %c0_10] : memref<64x128xf32, #tpu.memory_space<vmem>>, vector<64x128xf32>
      %13 = arith.truncf %12 : vector<64x128xf32> to vector<64x128xbf16>
      %c0_11 = arith.constant 0 : index
      %c0_12 = arith.constant 0 : index
      %14 = vector.load %arg5[%c0_11, %c0_12] : memref<64x128xbf16, #tpu.memory_space<vmem>>, vector<64x128xbf16>
      tpu.vector_store %arg5[%c0_11, %c0_12], %13 {strides = array<i32>} : memref<64x128xbf16, #tpu.memory_space<vmem>>, vector<64x128xbf16>,
    } else {
    }
    return
  }
  func.func @transform_0(%arg0: i32, %arg1: i32, %arg2: i32) -> (i32, i32) {
    %c0_i32 = arith.constant 0 : i32
    return %arg0, %arg2 : i32, i32
  }
  func.func @transform_1(%arg0: i32, %arg1: i32, %arg2: i32) -> (i32, i32) {
    %c0_i32 = arith.constant 0 : i32
    return %arg2, %arg1 : i32, i32
  }
  func.func @transform_2(%arg0: i32, %arg1: i32, %arg2: i32) -> (i32, i32) {
    %c0_i32 = arith.constant 0 : i32
    return %arg0, %arg1 : i32, i32
  }
}

</mosaic_0001>

<llo_original>
// kernel: tpu_custom_call.1
$region0: #{tpu_custom_call.1}
  #allocation0 [shape = 'u32[]', space=smem, size = 0x4, offset = 0x4, fixed_abs, tag = 'smem constant byte address 0x4 - core index']
  #allocation1 [shape = 'u32[72,128]{1,0:T(1,128)}', space=vmem, size = 0x9000, scoped, tag = 'internal scratch']
  #allocation2 [shape = 'f32[64,128]{1,0:T(8,128)}', space=vmem, size = 0x8000, scoped, tag = 'scratch operand']
  %s0 = inlined_call_operand.vmem [shape: bf16[126,256], index: 0, kind: input, shape index: {}]
  %s1 = inlined_call_operand.vmem [shape: bf16[256,320], index: 1, kind: input, shape index: {}]
  %s2 = inlined_call_operand.vmem [shape: bf16[126,320], index: 2, kind: output, shape index: {}]
  %s3 = sld [smem:[#allocation0]]
  $region168: #{tpu_custom_call.1} parent=0
    _
  %s5 = ssub.s32 1, %s3
  %s6 = scalar_select 0, %s5, %s3
  $region1: #{tpu_custom_call.1} parent=0
    #allocation3 [shape = 'u8[32768]{0}', space=vmem, size = 0x8000, scoped, tag = 'input window, operand 0']
    #allocation4 [shape = 'u8[65536]{0}', space=vmem, size = 0x10000, scoped, tag = 'input window, operand 1']
    #allocation5 [shape = 'u8[32768]{0}', space=vmem, size = 0x8000, scoped, tag = 'output window, operand 0']
    loop: start=0, step=1, limit=14
    $region2: #{tpu_custom_call.1} parent=1 // loop_pre_header
      _
    $region3: #{tpu_custom_call.1} parent=1 // loop_header
      %s8 = sphi 0, %s12
      %p9 = scmp.ge.s32.totalorder %s8, 14
      %s15 = sphi 0, %s34
      %s16 = sphi 0, %s30
      %s17 = sphi 0, %s26
      %s18 = sphi 0, %s15
      %s19 = sphi 0, %s16
      %s20 = sphi 0, %s17
      %s21 = sphi 0, %s18
      %s22 = sphi 0, %s19
      %s23 = sphi 0, %s20
      %s39 = sphi 0, %s41
      %s42 = sphi 0, %s39
      %s43 = sphi 0, %s42
      %s59 = sphi 0, %s43
      %s67 = sphi 0, %s69
      %s70 = sphi 0, %s67
      %s71 = sphi 0, %s70
      %s87 = sphi 0, %s71
      %s95 = sphi 0, %s97
      %s98 = sphi 0, %s95
      %s99 = sphi 0, %s98
      %s115 = sphi 0, %s99
    $region4: #{tpu_custom_call.1} parent=1 // loop_header_branch
      %11 = sbr.rel (%p9) target = $region8
    $region5: #{tpu_custom_call.1} parent=1 // loop_body
      %s13 = ssub.s32 %s8, 1
      %s14 = ssub.s32 %s8, 2
      %s24 = sadd.s32 1, %s17
      %p25 = scmp.ge.s32.totalorder %s24, 2
      %s26 = scalar_select %p25, 0, %s24
      %s27 = sadd.s32 1, %s16
      %s28 = scalar_select %p25, %s27, %s16
      %p29 = scmp.ge.s32.totalorder %s28, 3
      %s30 = scalar_select %p29, 0, %s28
      %s31 = sadd.s32 1, %s15
      %s32 = scalar_select %p29, %s31, %s15
      %p33 = scmp.ge.s32.totalorder %s32, 2
      %s34 = scalar_select %p33, 0, %s32
      %s35 = ssub.s32 %s15, %s34
      %s36 = ssub.s32 %s17, %s26
      %s37 = sor.u32 %s35, %s36
      %p38 = scmp.eq.s32.totalorder %s37, 0
      %s40 = sadd.s32 %s39, 1
      %s41 = scalar_select %p38, %s39, %s40
      %p44 = pneg %p38
      %p45 = scmp.eq.s32.totalorder %s8, 11
      %p46 = por %p44, %p45
      %p47 = scmp.ne.s32.totalorder %s39, %s42
      %p48 = scmp.eq.s32.totalorder %s8, 0
      %p49 = por %p47, %p48
      %p50 = scmp.ne.s32.totalorder %s39, %s42
      %p51 = scmp.eq.s32.totalorder %s13, 11
      %p52 = por %p50, %p51
      %p53 = scmp.ne.s32.totalorder %s42, %s43
      %p54 = scmp.eq.s32.totalorder %s13, 0
      %p55 = por %p53, %p54
      %p56 = scmp.ne.s32.totalorder %s42, %s43
      %p57 = scmp.eq.s32.totalorder %s14, 11
      %p58 = por %p56, %p57
      %p60 = scmp.ne.s32.totalorder %s43, %s59
      %p61 = scmp.eq.s32.totalorder %s14, 0
      %p62 = por %p60, %p61
      %s63 = ssub.s32 %s17, %s26
      %s64 = ssub.s32 %s16, %s30
      %s65 = sor.u32 %s63, %s64
      %p66 = scmp.eq.s32.totalorder %s65, 0
      %s68 = sadd.s32 %s67, 1
      %s69 = scalar_select %p66, %s67, %s68
      %p72 = pneg %p66
      %p73 = scmp.eq.s32.totalorder %s8, 11
      %p74 = por %p72, %p73
      %p75 = scmp.ne.s32.totalorder %s67, %s70
      %p76 = scmp.eq.s32.totalorder %s8, 0
      %p77 = por %p75, %p76
      %p78 = scmp.ne.s32.totalorder %s67, %s70
      %p79 = scmp.eq.s32.totalorder %s13, 11
      %p80 = por %p78, %p79
      %p81 = scmp.ne.s32.totalorder %s70, %s71
      %p82 = scmp.eq.s32.totalorder %s13, 0
      %p83 = por %p81, %p82
      %p84 = scmp.ne.s32.totalorder %s70, %s71
      %p85 = scmp.eq.s32.totalorder %s14, 11
      %p86 = por %p84, %p85
      %p88 = scmp.ne.s32.totalorder %s71, %s87
      %p89 = scmp.eq.s32.totalorder %s14, 0
      %p90 = por %p88, %p89
      %s91 = ssub.s32 %s15, %s34
      %s92 = ssub.s32 %s16, %s30
      %s93 = sor.u32 %s91, %s92
      %p94 = scmp.eq.s32.totalorder %s93, 0
      %s96 = sadd.s32 %s95, 1
      %s97 = scalar_select %p94, %s95, %s96
      %p100 = pneg %p94
      %p101 = scmp.eq.s32.totalorder %s8, 11
      %p102 = por %p100, %p101
      %p103 = scmp.ne.s32.totalorder %s95, %s98
      %p104 = scmp.eq.s32.totalorder %s8, 0
      %p105 = por %p103, %p104
      %p106 = scmp.ne.s32.totalorder %s95, %s98
      %p107 = scmp.eq.s32.totalorder %s13, 11
      %p108 = por %p106, %p107
      %p109 = scmp.ne.s32.totalorder %s98, %s99
      %p110 = scmp.eq.s32.totalorder %s13, 0
      %p111 = por %p109, %p110
      %p112 = scmp.ne.s32.totalorder %s98, %s99
      %p113 = scmp.eq.s32.totalorder %s14, 11
      %p114 = por %p112, %p113
      %p116 = scmp.ne.s32.totalorder %s99, %s115
      %p117 = scmp.eq.s32.totalorder %s14, 0
      %p118 = por %p116, %p117
      %p119 = scmp.le.s32.totalorder 1, %s8
      %p120 = scmp.lt.s32.totalorder %s8, 13
      %p121 = pnand %p119, %p120
      %p122 = pneg %p121
      // Predicated region
      $region9: #{tpu_custom_call.1} parent=5 // pred_check
        _
      $region10: #{tpu_custom_call.1} parent=5 // pred_check_branch
        %124 = sbr.rel (%p121) target = $region12
      $region11: #{tpu_custom_call.1} parent=5 // pred_region
        %s125 = ssub.s32 %s8, 1
      $region12: #{tpu_custom_call.1} parent=5 // pred_fallthru
        _
      %p126 = scmp.lt.s32.totalorder %s8, 12
      // Predicated region
      $region13: #{tpu_custom_call.1} parent=5 // pred_check
        %p127 = pneg %p126
      $region14: #{tpu_custom_call.1} parent=5 // pred_check_branch
        %129 = sbr.rel (%p127) target = $region16
      $region15: #{tpu_custom_call.1} parent=5 // pred_region
        // Predicated region
        $region17: #{tpu_custom_call.1} parent=15 // pred_check
          %p130 = pneg %p49
        $region18: #{tpu_custom_call.1} parent=15 // pred_check_branch
          %132 = sbr.rel (%p130) target = $region20
        $region19: #{tpu_custom_call.1} parent=15 // pred_region
          %s133 = sand.u32 %s39, 1
          %s134 = sand.u32 %s39, 1
          %s135 = smul.addr %s134, 32
          %s136 = scalar_lea.vmem [#allocation3], %s135
          %s137 = smul.u32 8, %s15
          %s138 = smul.addr %s137, 2
          %s139 = sadd.s32 %s17, %s138
          %s140 = smul.addr %s139, 4
          %s141 = scalar_lea.vmem %s0, %s140
          // Predicated region
          $region21: #{tpu_custom_call.1} parent=19 // pred_check
            _
          $region22: #{tpu_custom_call.1} parent=19 // pred_check_branch
            %143 = sbr.rel (0) target = $region24
          $region23: #{tpu_custom_call.1} parent=19 // pred_region
            // Predicated region
            $region25: #{tpu_custom_call.1} parent=23 // pred_check
              _
            $region26: #{tpu_custom_call.1} parent=23 // pred_check_branch
              %145 = sbr.rel target = $region28
            $region27: #{tpu_custom_call.1} parent=23 // pred_region
              // Predicated region
              $region40: #{tpu_custom_call.1} parent=27 // pred_check
                _
              $region41: #{tpu_custom_call.1} parent=27 // pred_check_branch
                %175 = sbr.rel (0) target = $region43
              $region42: #{tpu_custom_call.1} parent=27 // pred_region
                loop: start=0, step=1, limit=1
                $region44: #{tpu_custom_call.1} parent=42 // loop_pre_header
                  _
                $region45: #{tpu_custom_call.1} parent=42 // loop_header
                  %s177 = sphi 0, %s181
                  %p178 = scmp.ge.s32.totalorder %s177, 1
                  %s182 = sphi %s141, %s141
                  %s183 = sphi %s136, %s136
                $region46: #{tpu_custom_call.1} parent=42 // loop_header_branch
                  %180 = sbr.rel (%p178) target = $region50
                $region47: #{tpu_custom_call.1} parent=42 // loop_body
                  _
                $region48: #{tpu_custom_call.1} parent=42 // loop_footer
                  %s181 = sadd.s32 1, %s177
                $region49: #{tpu_custom_call.1} parent=42 // loop_footer_branch
                  %176 = sbr.rel target = $region45
                $region50: #{tpu_custom_call.1} parent=42 // loop_exit
                  _
                %s185 = ssub.s32 16, 1
                loop: start=0, step=1, limit=1
                $region51: #{tpu_custom_call.1} parent=42 // loop_pre_header
                  _
                $region52: #{tpu_custom_call.1} parent=42 // loop_header
                  %s187 = sphi 0, %s191
                  %p188 = scmp.ge.s32.totalorder %s187, 1
                  %s192 = sphi %s141, %s141
                  %s193 = sphi %s136, %s136
                $region53: #{tpu_custom_call.1} parent=42 // loop_header_branch
                  %190 = sbr.rel (%p188) target = $region57
                $region54: #{tpu_custom_call.1} parent=42 // loop_body
                  %v194 = vld [vmem:[%s192] sm:%s185]
                  %195 = vst [vmem:[%s193] sm:%s185] %v194
                  %v196 = vld [vmem:[%s192 + $0x8] sm:%s185]
                  %197 = vst [vmem:[%s193 + $0x4] sm:%s185] %v196
                  %v198 = vld [vmem:[%s192 + $0x10] sm:%s185]
                  %199 = vst [vmem:[%s193 + $0x8] sm:%s185] %v198
                  %v200 = vld [vmem:[%s192 + $0x18] sm:%s185]
                  %201 = vst [vmem:[%s193 + $0xc] sm:%s185] %v200
                  %v202 = vld [vmem:[%s192 + $0x20] sm:%s185]
                  %203 = vst [vmem:[%s193 + $0x10] sm:%s185] %v202
                  %v204 = vld [vmem:[%s192 + $0x28] sm:%s185]
                  %205 = vst [vmem:[%s193 + $0x14] sm:%s185] %v204
                  %v206 = vld [vmem:[%s192 + $0x30] sm:%s185]
                  %207 = vst [vmem:[%s193 + $0x18] sm:%s185] %v206
                  %v208 = vld [vmem:[%s192 + $0x38] sm:%s185]
                  %209 = vst [vmem:[%s193 + $0x1c] sm:%s185] %v208
                $region55: #{tpu_custom_call.1} parent=42 // loop_footer
                  %s191 = sadd.s32 1, %s187
                $region56: #{tpu_custom_call.1} parent=42 // loop_footer_branch
                  %186 = sbr.rel target = $region52
                $region57: #{tpu_custom_call.1} parent=42 // loop_exit
                  _
              $region43: #{tpu_custom_call.1} parent=27 // pred_fallthru
                _
            $region28: #{tpu_custom_call.1} parent=23 // pred_fallthru
              _
            // Predicated region
            $region29: #{tpu_custom_call.1} parent=23 // pred_check
              _
            $region30: #{tpu_custom_call.1} parent=23 // pred_check_branch
              %147 = sbr.rel (0) target = $region32
            $region31: #{tpu_custom_call.1} parent=23 // pred_region
              %s149 = ssub.s32 16, 1
              loop: start=0, step=1, limit=1
              $region33: #{tpu_custom_call.1} parent=31 // loop_pre_header
                _
              $region34: #{tpu_custom_call.1} parent=31 // loop_header
                %s151 = sphi 0, %s155
                %p152 = scmp.ge.s32.totalorder %s151, 1
                %s156 = sphi %s141, %s141
                %s157 = sphi %s136, %s136
              $region35: #{tpu_custom_call.1} parent=31 // loop_header_branch
                %154 = sbr.rel (%p152) target = $region39
              $region36: #{tpu_custom_call.1} parent=31 // loop_body
                %v158 = vld [vmem:[%s156] sm:%s149]
                %159 = vst [vmem:[%s157] sm:%s149] %v158
                %v160 = vld [vmem:[%s156 + $0x8] sm:%s149]
                %161 = vst [vmem:[%s157 + $0x4] sm:%s149] %v160
                %v162 = vld [vmem:[%s156 + $0x10] sm:%s149]
                %163 = vst [vmem:[%s157 + $0x8] sm:%s149] %v162
                %v164 = vld [vmem:[%s156 + $0x18] sm:%s149]
                %165 = vst [vmem:[%s157 + $0xc] sm:%s149] %v164
                %v166 = vld [vmem:[%s156 + $0x20] sm:%s149]
                %167 = vst [vmem:[%s157 + $0x10] sm:%s149] %v166
                %v168 = vld [vmem:[%s156 + $0x28] sm:%s149]
                %169 = vst [vmem:[%s157 + $0x14] sm:%s149] %v168
                %v170 = vld [vmem:[%s156 + $0x30] sm:%s149]
                %171 = vst [vmem:[%s157 + $0x18] sm:%s149] %v170
                %v172 = vld [vmem:[%s156 + $0x38] sm:%s149]
                %173 = vst [vmem:[%s157 + $0x1c] sm:%s149] %v172
              $region37: #{tpu_custom_call.1} parent=31 // loop_footer
                %s155 = sadd.s32 1, %s151
              $region38: #{tpu_custom_call.1} parent=31 // loop_footer_branch
                %150 = sbr.rel target = $region34
              $region39: #{tpu_custom_call.1} parent=31 // loop_exit
                _
            $region32: #{tpu_custom_call.1} parent=23 // pred_fallthru
              _
          $region24: #{tpu_custom_call.1} parent=19 // pred_fallthru
            _
          %210 = vnop
        $region20: #{tpu_custom_call.1} parent=15 // pred_fallthru
          _
        // Predicated region
        $region58: #{tpu_custom_call.1} parent=15 // pred_check
          %p211 = pneg %p77
        $region59: #{tpu_custom_call.1} parent=15 // pred_check_branch
          %213 = sbr.rel (%p211) target = $region61
        $region60: #{tpu_custom_call.1} parent=15 // pred_region
          %s214 = sand.u32 %s67, 1
          %s215 = sand.u32 %s67, 1
          %s216 = smul.addr %s215, 64
          %s217 = scalar_lea.vmem [#allocation4], %s216
          %s218 = smul.u32 16, %s17
          %s219 = smul.addr %s218, 3
          %s220 = sadd.s32 %s16, %s219
          %s221 = smul.addr %s220, 4
          %s222 = scalar_lea.vmem %s1, %s221
          // Predicated region
          $region62: #{tpu_custom_call.1} parent=60 // pred_check
            _
          $region63: #{tpu_custom_call.1} parent=60 // pred_check_branch
            %224 = sbr.rel (0) target = $region65
          $region64: #{tpu_custom_call.1} parent=60 // pred_region
            // Predicated region
            $region66: #{tpu_custom_call.1} parent=64 // pred_check
              _
            $region67: #{tpu_custom_call.1} parent=64 // pred_check_branch
              %226 = sbr.rel target = $region69
            $region68: #{tpu_custom_call.1} parent=64 // pred_region
              // Predicated region
              $region81: #{tpu_custom_call.1} parent=68 // pred_check
                _
              $region82: #{tpu_custom_call.1} parent=68 // pred_check_branch
                %272 = sbr.rel (0) target = $region84
              $region83: #{tpu_custom_call.1} parent=68 // pred_region
                loop: start=0, step=1, limit=1
                $region85: #{tpu_custom_call.1} parent=83 // loop_pre_header
                  _
                $region86: #{tpu_custom_call.1} parent=83 // loop_header
                  %s274 = sphi 0, %s278
                  %p275 = scmp.ge.s32.totalorder %s274, 1
                  %s279 = sphi %s222, %s222
                  %s280 = sphi %s217, %s217
                $region87: #{tpu_custom_call.1} parent=83 // loop_header_branch
                  %277 = sbr.rel (%p275) target = $region91
                $region88: #{tpu_custom_call.1} parent=83 // loop_body
                  _
                $region89: #{tpu_custom_call.1} parent=83 // loop_footer
                  %s278 = sadd.s32 1, %s274
                $region90: #{tpu_custom_call.1} parent=83 // loop_footer_branch
                  %273 = sbr.rel target = $region86
                $region91: #{tpu_custom_call.1} parent=83 // loop_exit
                  _
                %s282 = ssub.s32 16, 1
                loop: start=0, step=1, limit=1
                $region92: #{tpu_custom_call.1} parent=83 // loop_pre_header
                  _
                $region93: #{tpu_custom_call.1} parent=83 // loop_header
                  %s284 = sphi 0, %s288
                  %p285 = scmp.ge.s32.totalorder %s284, 1
                  %s289 = sphi %s222, %s222
                  %s290 = sphi %s217, %s217
                $region94: #{tpu_custom_call.1} parent=83 // loop_header_branch
                  %287 = sbr.rel (%p285) target = $region98
                $region95: #{tpu_custom_call.1} parent=83 // loop_body
                  %v291 = vld [vmem:[%s289] sm:%s282]
                  %292 = vst [vmem:[%s290] sm:%s282] %v291
                  %v293 = vld [vmem:[%s289 + $0xc] sm:%s282]
                  %294 = vst [vmem:[%s290 + $0x4] sm:%s282] %v293
                  %v295 = vld [vmem:[%s289 + $0x18] sm:%s282]
                  %296 = vst [vmem:[%s290 + $0x8] sm:%s282] %v295
                  %v297 = vld [vmem:[%s289 + $0x24] sm:%s282]
                  %298 = vst [vmem:[%s290 + $0xc] sm:%s282] %v297
                  %v299 = vld [vmem:[%s289 + $0x30] sm:%s282]
                  %300 = vst [vmem:[%s290 + $0x10] sm:%s282] %v299
                  %v301 = vld [vmem:[%s289 + $0x3c] sm:%s282]
                  %302 = vst [vmem:[%s290 + $0x14] sm:%s282] %v301
                  %v303 = vld [vmem:[%s289 + $0x48] sm:%s282]
                  %304 = vst [vmem:[%s290 + $0x18] sm:%s282] %v303
                  %v305 = vld [vmem:[%s289 + $0x54] sm:%s282]
                  %306 = vst [vmem:[%s290 + $0x1c] sm:%s282] %v305
                  %v307 = vld [vmem:[%s289 + $0x60] sm:%s282]
                  %308 = vst [vmem:[%s290 + $0x20] sm:%s282] %v307
                  %v309 = vld [vmem:[%s289 + $0x6c] sm:%s282]
                  %310 = vst [vmem:[%s290 + $0x24] sm:%s282] %v309
                  %v311 = vld [vmem:[%s289 + $0x78] sm:%s282]
                  %312 = vst [vmem:[%s290 + $0x28] sm:%s282] %v311
                  %v313 = vld [vmem:[%s289 + $0x84] sm:%s282]
                  %314 = vst [vmem:[%s290 + $0x2c] sm:%s282] %v313
                  %v315 = vld [vmem:[%s289 + $0x90] sm:%s282]
                  %316 = vst [vmem:[%s290 + $0x30] sm:%s282] %v315
                  %v317 = vld [vmem:[%s289 + $0x9c] sm:%s282]
                  %318 = vst [vmem:[%s290 + $0x34] sm:%s282] %v317
                  %v319 = vld [vmem:[%s289 + $0xa8] sm:%s282]
                  %320 = vst [vmem:[%s290 + $0x38] sm:%s282] %v319
                  %v321 = vld [vmem:[%s289 + $0xb4] sm:%s282]
                  %322 = vst [vmem:[%s290 + $0x3c] sm:%s282] %v321
                $region96: #{tpu_custom_call.1} parent=83 // loop_footer
                  %s288 = sadd.s32 1, %s284
                $region97: #{tpu_custom_call.1} parent=83 // loop_footer_branch
                  %283 = sbr.rel target = $region93
                $region98: #{tpu_custom_call.1} parent=83 // loop_exit
                  _
              $region84: #{tpu_custom_call.1} parent=68 // pred_fallthru
                _
            $region69: #{tpu_custom_call.1} parent=64 // pred_fallthru
              _
            // Predicated region
            $region70: #{tpu_custom_call.1} parent=64 // pred_check
              _
            $region71: #{tpu_custom_call.1} parent=64 // pred_check_branch
              %228 = sbr.rel (0) target = $region73
            $region72: #{tpu_custom_call.1} parent=64 // pred_region
              %s230 = ssub.s32 16, 1
              loop: start=0, step=1, limit=1
              $region74: #{tpu_custom_call.1} parent=72 // loop_pre_header
                _
              $region75: #{tpu_custom_call.1} parent=72 // loop_header
                %s232 = sphi 0, %s236
                %p233 = scmp.ge.s32.totalorder %s232, 1
                %s237 = sphi %s222, %s222
                %s238 = sphi %s217, %s217
              $region76: #{tpu_custom_call.1} parent=72 // loop_header_branch
                %235 = sbr.rel (%p233) target = $region80
              $region77: #{tpu_custom_call.1} parent=72 // loop_body
                %v239 = vld [vmem:[%s237] sm:%s230]
                %240 = vst [vmem:[%s238] sm:%s230] %v239
                %v241 = vld [vmem:[%s237 + $0xc] sm:%s230]
                %242 = vst [vmem:[%s238 + $0x4] sm:%s230] %v241
                %v243 = vld [vmem:[%s237 + $0x18] sm:%s230]
                %244 = vst [vmem:[%s238 + $0x8] sm:%s230] %v243
                %v245 = vld [vmem:[%s237 + $0x24] sm:%s230]
                %246 = vst [vmem:[%s238 + $0xc] sm:%s230] %v245
                %v247 = vld [vmem:[%s237 + $0x30] sm:%s230]
                %248 = vst [vmem:[%s238 + $0x10] sm:%s230] %v247
                %v249 = vld [vmem:[%s237 + $0x3c] sm:%s230]
                %250 = vst [vmem:[%s238 + $0x14] sm:%s230] %v249
                %v251 = vld [vmem:[%s237 + $0x48] sm:%s230]
                %252 = vst [vmem:[%s238 + $0x18] sm:%s230] %v251
                %v253 = vld [vmem:[%s237 + $0x54] sm:%s230]
                %254 = vst [vmem:[%s238 + $0x1c] sm:%s230] %v253
                %v255 = vld [vmem:[%s237 + $0x60] sm:%s230]
                %256 = vst [vmem:[%s238 + $0x20] sm:%s230] %v255
                %v257 = vld [vmem:[%s237 + $0x6c] sm:%s230]
                %258 = vst [vmem:[%s238 + $0x24] sm:%s230] %v257
                %v259 = vld [vmem:[%s237 + $0x78] sm:%s230]
                %260 = vst [vmem:[%s238 + $0x28] sm:%s230] %v259
                %v261 = vld [vmem:[%s237 + $0x84] sm:%s230]
                %262 = vst [vmem:[%s238 + $0x2c] sm:%s230] %v261
                %v263 = vld [vmem:[%s237 + $0x90] sm:%s230]
                %264 = vst [vmem:[%s238 + $0x30] sm:%s230] %v263
                %v265 = vld [vmem:[%s237 + $0x9c] sm:%s230]
                %266 = vst [vmem:[%s238 + $0x34] sm:%s230] %v265
                %v267 = vld [vmem:[%s237 + $0xa8] sm:%s230]
                %268 = vst [vmem:[%s238 + $0x38] sm:%s230] %v267
                %v269 = vld [vmem:[%s237 + $0xb4] sm:%s230]
                %270 = vst [vmem:[%s238 + $0x3c] sm:%s230] %v269
              $region78: #{tpu_custom_call.1} parent=72 // loop_footer
                %s236 = sadd.s32 1, %s232
              $region79: #{tpu_custom_call.1} parent=72 // loop_footer_branch
                %231 = sbr.rel target = $region75
              $region80: #{tpu_custom_call.1} parent=72 // loop_exit
                _
            $region73: #{tpu_custom_call.1} parent=64 // pred_fallthru
              _
          $region65: #{tpu_custom_call.1} parent=60 // pred_fallthru
            _
          %323 = vnop
        $region61: #{tpu_custom_call.1} parent=15 // pred_fallthru
          _
      $region16: #{tpu_custom_call.1} parent=5 // pred_fallthru
        _
      %p324 = scmp.le.s32.totalorder 1, %s8
      %p325 = scmp.lt.s32.totalorder %s8, 13
      %p326 = pnand %p324, %p325
      %p327 = pneg %p326
      // Predicated region
      $region99: #{tpu_custom_call.1} parent=5 // pred_check
        _
      $region100: #{tpu_custom_call.1} parent=5 // pred_check_branch
        %329 = sbr.rel (%p326) target = $region102
      $region101: #{tpu_custom_call.1} parent=5 // pred_region
        %s330 = ssub.s32 %s8, 1
        %s331 = sand.u32 %s42, 1
        %s332 = sand.u32 %s42, 1
        %s333 = smul.addr %s332, 32
        %s334 = scalar_lea.vmem [#allocation3], %s333
        // Predicated region
        $region103: #{tpu_custom_call.1} parent=101 // pred_check
          %p335 = pneg %p55
        $region104: #{tpu_custom_call.1} parent=101 // pred_check_branch
          %337 = sbr.rel (%p335) target = $region106
        $region105: #{tpu_custom_call.1} parent=101 // pred_region
          _
        $region106: #{tpu_custom_call.1} parent=101 // pred_fallthru
          _
        %s338 = sand.u32 %s70, 1
        %s339 = sand.u32 %s70, 1
        %s340 = smul.addr %s339, 64
        %s341 = scalar_lea.vmem [#allocation4], %s340
        // Predicated region
        $region107: #{tpu_custom_call.1} parent=101 // pred_check
          %p342 = pneg %p83
        $region108: #{tpu_custom_call.1} parent=101 // pred_check_branch
          %344 = sbr.rel (%p342) target = $region110
        $region109: #{tpu_custom_call.1} parent=101 // pred_region
          _
        $region110: #{tpu_custom_call.1} parent=101 // pred_fallthru
          _
        %s345 = sand.u32 %s42, 1
        %s346 = sand.u32 %s42, 1
        %s347 = smul.addr %s346, 32
        %s348 = scalar_lea.vmem [#allocation3], %s347
        %p349 = pneg %p55
        %p350 = pneg %p52
        %s351 = sand.u32 %s70, 1
        %s352 = sand.u32 %s70, 1
        %s353 = smul.addr %s352, 64
        %s354 = scalar_lea.vmem [#allocation4], %s353
        %p355 = pneg %p83
        %p356 = pneg %p80
        %p357 = pneg %p111
        %p358 = pneg %p108
        %s359 = sand.u32 %s98, 1
        %s360 = sand.u32 %s98, 1
        %s361 = smul.addr %s360, 32
        %s362 = scalar_lea.vmem [#allocation5], %s361
        %s363 = smul.u32 8, %s18
        %s364 = smul.u32 16, %s20
        %s365 = smul.u32 8, %s18
        %p366 = scmp.eq.s32.totalorder %s20, 0
        // Predicated region
        $region111: #{tpu_custom_call.1} parent=101 // pred_check
          %p367 = pneg %p366
        $region112: #{tpu_custom_call.1} parent=101 // pred_check_branch
          %369 = sbr.rel (%p367) target = $region114
        $region113: #{tpu_custom_call.1} parent=101 // pred_region
          %370 = vst [vmem:[#allocation2] sm:$0xff] 0.0
          %371 = vst [vmem:[#allocation2 + $0x8] sm:$0xff] 0.0
          %372 = vst [vmem:[#allocation2 + $0x10] sm:$0xff] 0.0
          %373 = vst [vmem:[#allocation2 + $0x18] sm:$0xff] 0.0
          %374 = vst [vmem:[#allocation2 + $0x20] sm:$0xff] 0.0
          %375 = vst [vmem:[#allocation2 + $0x28] sm:$0xff] 0.0
          %376 = vst [vmem:[#allocation2 + $0x30] sm:$0xff] 0.0
          %377 = vst [vmem:[#allocation2 + $0x38] sm:$0xff] 0.0
        $region114: #{tpu_custom_call.1} parent=101 // pred_fallthru
          _
        %v378 = vld [vmem:[#allocation2] sm:$0xff]
        %v379 = vld [vmem:[#allocation2 + $0x8] sm:$0xff]
        %v380 = vld [vmem:[#allocation2 + $0x10] sm:$0xff]
        %v381 = vld [vmem:[#allocation2 + $0x18] sm:$0xff]
        %v382 = vld [vmem:[#allocation2 + $0x20] sm:$0xff]
        %v383 = vld [vmem:[#allocation2 + $0x28] sm:$0xff]
        %v384 = vld [vmem:[#allocation2 + $0x30] sm:$0xff]
        %v385 = vld [vmem:[#allocation2 + $0x38] sm:$0xff]
        %v386 = vld [vmem:[%s334] sm:$0xf]
        %v387 = vld [vmem:[%s334 + $0x4] sm:$0xf]
        %v388 = vld [vmem:[%s334 + $0x8] sm:$0xf]
        %v389 = vld [vmem:[%s334 + $0xc] sm:$0xf]
        %v390 = vld [vmem:[%s334 + $0x10] sm:$0xf]
        %v391 = vld [vmem:[%s334 + $0x14] sm:$0xf]
        %v392 = vld [vmem:[%s334 + $0x18] sm:$0xf]
        %v393 = vld [vmem:[%s334 + $0x1c] sm:$0xf]
        %v394 = vld [vmem:[%s341] sm:$0xf]
        %v395 = vld [vmem:[%s341 + $0x4] sm:$0xf]
        %v396 = vld [vmem:[%s341 + $0x8] sm:$0xf]
        %v397 = vld [vmem:[%s341 + $0xc] sm:$0xf]
        %v398 = vld [vmem:[%s341 + $0x10] sm:$0xf]
        %v399 = vld [vmem:[%s341 + $0x14] sm:$0xf]
        %v400 = vld [vmem:[%s341 + $0x18] sm:$0xf]
        %v401 = vld [vmem:[%s341 + $0x1c] sm:$0xf]
        %v402 = vld [vmem:[%s341 + $0x20] sm:$0xf]
        %v403 = vld [vmem:[%s341 + $0x24] sm:$0xf]
        %v404 = vld [vmem:[%s341 + $0x28] sm:$0xf]
        %v405 = vld [vmem:[%s341 + $0x2c] sm:$0xf]
        %v406 = vld [vmem:[%s341 + $0x30] sm:$0xf]
        %v407 = vld [vmem:[%s341 + $0x34] sm:$0xf]
        %v408 = vld [vmem:[%s341 + $0x38] sm:$0xf]
        %v409 = vld [vmem:[%s341 + $0x3c] sm:$0xf]
        %v418 = vunpack.c.l.b16 %v386
        %v419 = vunpack.c.l.b16 %v387
        %v420 = vunpack.c.l.b16 %v388
        %v421 = vunpack.c.l.b16 %v389
        %v422 = vunpack.c.l.b16 %v390
        %v423 = vunpack.c.l.b16 %v391
        %v424 = vunpack.c.l.b16 %v392
        %v425 = vunpack.c.l.b16 %v393
        %v426 = vpack.c.b16 %v419, %v418
        %v427 = vpack.c.b16 %v421, %v420
        %v428 = vpack.c.b16 %v423, %v422
        %v429 = vpack.c.b16 %v425, %v424
        %v450 = vunpack.c.l.b16 %v394
        %v451 = vunpack.c.l.b16 %v395
        %v452 = vunpack.c.l.b16 %v396
        %v453 = vunpack.c.l.b16 %v397
        %v454 = vunpack.c.l.b16 %v398
        %v455 = vunpack.c.l.b16 %v399
        %v456 = vunpack.c.l.b16 %v400
        %v457 = vunpack.c.l.b16 %v401
        %v458 = vunpack.c.l.b16 %v402
        %v459 = vunpack.c.l.b16 %v403
        %v460 = vunpack.c.l.b16 %v404
        %v461 = vunpack.c.l.b16 %v405
        %v462 = vunpack.c.l.b16 %v406
        %v463 = vunpack.c.l.b16 %v407
        %v464 = vunpack.c.l.b16 %v408
        %v465 = vunpack.c.l.b16 %v409
        %v466 = vpack.c.b16 %v451, %v450
        %v467 = vpack.c.b16 %v453, %v452
        %v468 = vpack.c.b16 %v455, %v454
        %v469 = vpack.c.b16 %v457, %v456
        %v470 = vpack.c.b16 %v459, %v458
        %v471 = vpack.c.b16 %v461, %v460
        %v472 = vpack.c.b16 %v463, %v462
        %v473 = vpack.c.b16 %v465, %v464
        %482 = vmatpush.bf16.msra.mxu0 %v473
        %483 = vmatpush.bf16.msra.mxu0 %v472
        %484 = vmatpush.bf16.msra.mxu0 %v471
        %485 = vmatpush.bf16.msra.mxu0 %v470
        %486 = vmatpush.bf16.msra.mxu0 %v469
        %487 = vmatpush.bf16.msra.mxu0 %v468
        %488 = vmatpush.bf16.msra.mxu0 %v467
        %489 = vmatpush.bf16.msra.mxu0 %v466
        %490 = vmatmul.bf16.gmra.mxu0 %v426
        %v491 = vpop.f32.mrf.mxu0
        %v492 = vadd.f32 0.0, %v491
        %v493 = vpop.f32.mrf.mxu0
        %v494 = vadd.f32 0.0, %v493
        %495 = vmatmul.bf16.gmra.mxu0 %v427
        %v496 = vpop.f32.mrf.mxu0
        %v497 = vadd.f32 0.0, %v496
        %v498 = vpop.f32.mrf.mxu0
        %v499 = vadd.f32 0.0, %v498
        %500 = vmatmul.bf16.gmra.mxu0 %v428
        %v501 = vpop.f32.mrf.mxu0
        %v502 = vadd.f32 0.0, %v501
        %v503 = vpop.f32.mrf.mxu0
        %v504 = vadd.f32 0.0, %v503
        %505 = vmatmul.bf16.gmra.mxu0 %v429
        %v506 = vpop.f32.mrf.mxu0
        %v507 = vadd.f32 0.0, %v506
        %v508 = vpop.f32.mrf.mxu0
        %v509 = vadd.f32 0.0, %v508
        %510 = vdwg.mxu0
        %v511 = vadd.f32 %v378, %v492
        %v512 = vadd.f32 %v379, %v494
        %v513 = vadd.f32 %v380, %v497
        %v514 = vadd.f32 %v381, %v499
        %v515 = vadd.f32 %v382, %v502
        %v516 = vadd.f32 %v383, %v504
        %v517 = vadd.f32 %v384, %v507
        %v518 = vadd.f32 %v385, %v509
        %519 = vst [vmem:[#allocation2] sm:$0xff] %v511
        %520 = vst [vmem:[#allocation2 + $0x8] sm:$0xff] %v512
        %521 = vst [vmem:[#allocation2 + $0x10] sm:$0xff] %v513
        %522 = vst [vmem:[#allocation2 + $0x18] sm:$0xff] %v514
        %523 = vst [vmem:[#allocation2 + $0x20] sm:$0xff] %v515
        %524 = vst [vmem:[#allocation2 + $0x28] sm:$0xff] %v516
        %525 = vst [vmem:[#allocation2 + $0x30] sm:$0xff] %v517
        %526 = vst [vmem:[#allocation2 + $0x38] sm:$0xff] %v518
        %p527 = scmp.eq.s32.totalorder %s20, 1
        // Predicated region
        $region115: #{tpu_custom_call.1} parent=101 // pred_check
          %p528 = pneg %p527
        $region116: #{tpu_custom_call.1} parent=101 // pred_check_branch
          %530 = sbr.rel (%p528) target = $region118
        $region117: #{tpu_custom_call.1} parent=101 // pred_region
          %v531 = vld [vmem:[#allocation2] sm:$0xff]
          %v532 = vld [vmem:[#allocation2 + $0x8] sm:$0xff]
          %v533 = vld [vmem:[#allocation2 + $0x10] sm:$0xff]
          %v534 = vld [vmem:[#allocation2 + $0x18] sm:$0xff]
          %v535 = vld [vmem:[#allocation2 + $0x20] sm:$0xff]
          %v536 = vld [vmem:[#allocation2 + $0x28] sm:$0xff]
          %v537 = vld [vmem:[#allocation2 + $0x30] sm:$0xff]
          %v538 = vld [vmem:[#allocation2 + $0x38] sm:$0xff]
          %v539 = vpack.c.bf16 %v531, %v531
          %v540 = vpack.c.bf16 %v532, %v532
          %v541 = vpack.c.bf16 %v533, %v533
          %v542 = vpack.c.bf16 %v534, %v534
          %v543 = vpack.c.bf16 %v535, %v535
          %v544 = vpack.c.bf16 %v536, %v536
          %v545 = vpack.c.bf16 %v537, %v537
          %v546 = vpack.c.bf16 %v538, %v538
          %547 = vst [vmem:[%s362] sm:$0xf] %v539
          %548 = vst [vmem:[%s362 + $0x4] sm:$0xf] %v540
          %549 = vst [vmem:[%s362 + $0x8] sm:$0xf] %v541
          %550 = vst [vmem:[%s362 + $0xc] sm:$0xf] %v542
          %551 = vst [vmem:[%s362 + $0x10] sm:$0xf] %v543
          %552 = vst [vmem:[%s362 + $0x14] sm:$0xf] %v544
          %553 = vst [vmem:[%s362 + $0x18] sm:$0xf] %v545
          %554 = vst [vmem:[%s362 + $0x1c] sm:$0xf] %v546
        $region118: #{tpu_custom_call.1} parent=101 // pred_fallthru
          _
        %s555 = sand.u32 %s98, 1
        %s556 = sand.u32 %s98, 1
        %s557 = smul.addr %s556, 32
        %s558 = scalar_lea.vmem [#allocation5], %s557
        // Predicated region
        $region119: #{tpu_custom_call.1} parent=101 // pred_check
          %p559 = pneg %p108
        $region120: #{tpu_custom_call.1} parent=101 // pred_check_branch
          %561 = sbr.rel (%p559) target = $region122
        $region121: #{tpu_custom_call.1} parent=101 // pred_region
          %s562 = smul.u32 8, %s18
          %s563 = smul.addr %s562, 3
          %s564 = sadd.s32 %s19, %s563
          %s565 = smul.addr %s564, 4
          %s566 = scalar_lea.vmem %s2, %s565
          // Predicated region
          $region123: #{tpu_custom_call.1} parent=121 // pred_check
            _
          $region124: #{tpu_custom_call.1} parent=121 // pred_check_branch
            %568 = sbr.rel (0) target = $region126
          $region125: #{tpu_custom_call.1} parent=121 // pred_region
            // Predicated region
            $region127: #{tpu_custom_call.1} parent=125 // pred_check
              _
            $region128: #{tpu_custom_call.1} parent=125 // pred_check_branch
              %570 = sbr.rel target = $region130
            $region129: #{tpu_custom_call.1} parent=125 // pred_region
              // Predicated region
              $region142: #{tpu_custom_call.1} parent=129 // pred_check
                _
              $region143: #{tpu_custom_call.1} parent=129 // pred_check_branch
                %600 = sbr.rel (0) target = $region145
              $region144: #{tpu_custom_call.1} parent=129 // pred_region
                loop: start=0, step=1, limit=1
                $region146: #{tpu_custom_call.1} parent=144 // loop_pre_header
                  _
                $region147: #{tpu_custom_call.1} parent=144 // loop_header
                  %s602 = sphi 0, %s606
                  %p603 = scmp.ge.s32.totalorder %s602, 1
                  %s607 = sphi %s558, %s558
                  %s608 = sphi %s566, %s566
                $region148: #{tpu_custom_call.1} parent=144 // loop_header_branch
                  %605 = sbr.rel (%p603) target = $region152
                $region149: #{tpu_custom_call.1} parent=144 // loop_body
                  _
                $region150: #{tpu_custom_call.1} parent=144 // loop_footer
                  %s606 = sadd.s32 1, %s602
                $region151: #{tpu_custom_call.1} parent=144 // loop_footer_branch
                  %601 = sbr.rel target = $region147
                $region152: #{tpu_custom_call.1} parent=144 // loop_exit
                  _
                %s610 = ssub.s32 16, 1
                loop: start=0, step=1, limit=1
                $region153: #{tpu_custom_call.1} parent=144 // loop_pre_header
                  _
                $region154: #{tpu_custom_call.1} parent=144 // loop_header
                  %s612 = sphi 0, %s616
                  %p613 = scmp.ge.s32.totalorder %s612, 1
                  %s617 = sphi %s558, %s558
                  %s618 = sphi %s566, %s566
                $region155: #{tpu_custom_call.1} parent=144 // loop_header_branch
                  %615 = sbr.rel (%p613) target = $region159
                $region156: #{tpu_custom_call.1} parent=144 // loop_body
                  %v619 = vld [vmem:[%s617] sm:%s610]
                  %620 = vst [vmem:[%s618] sm:%s610] %v619
                  %v621 = vld [vmem:[%s617 + $0x4] sm:%s610]
                  %622 = vst [vmem:[%s618 + $0xc] sm:%s610] %v621
                  %v623 = vld [vmem:[%s617 + $0x8] sm:%s610]
                  %624 = vst [vmem:[%s618 + $0x18] sm:%s610] %v623
                  %v625 = vld [vmem:[%s617 + $0xc] sm:%s610]
                  %626 = vst [vmem:[%s618 + $0x24] sm:%s610] %v625
                  %v627 = vld [vmem:[%s617 + $0x10] sm:%s610]
                  %628 = vst [vmem:[%s618 + $0x30] sm:%s610] %v627
                  %v629 = vld [vmem:[%s617 + $0x14] sm:%s610]
                  %630 = vst [vmem:[%s618 + $0x3c] sm:%s610] %v629
                  %v631 = vld [vmem:[%s617 + $0x18] sm:%s610]
                  %632 = vst [vmem:[%s618 + $0x48] sm:%s610] %v631
                  %v633 = vld [vmem:[%s617 + $0x1c] sm:%s610]
                  %634 = vst [vmem:[%s618 + $0x54] sm:%s610] %v633
                $region157: #{tpu_custom_call.1} parent=144 // loop_footer
                  %s616 = sadd.s32 1, %s612
                $region158: #{tpu_custom_call.1} parent=144 // loop_footer_branch
                  %611 = sbr.rel target = $region154
                $region159: #{tpu_custom_call.1} parent=144 // loop_exit
                  _
              $region145: #{tpu_custom_call.1} parent=129 // pred_fallthru
                _
            $region130: #{tpu_custom_call.1} parent=125 // pred_fallthru
              _
            // Predicated region
            $region131: #{tpu_custom_call.1} parent=125 // pred_check
              _
            $region132: #{tpu_custom_call.1} parent=125 // pred_check_branch
              %572 = sbr.rel (0) target = $region134
            $region133: #{tpu_custom_call.1} parent=125 // pred_region
              %s574 = ssub.s32 16, 1
              loop: start=0, step=1, limit=1
              $region135: #{tpu_custom_call.1} parent=133 // loop_pre_header
                _
              $region136: #{tpu_custom_call.1} parent=133 // loop_header
                %s576 = sphi 0, %s580
                %p577 = scmp.ge.s32.totalorder %s576, 1
                %s581 = sphi %s558, %s558
                %s582 = sphi %s566, %s566
              $region137: #{tpu_custom_call.1} parent=133 // loop_header_branch
                %579 = sbr.rel (%p577) target = $region141
              $region138: #{tpu_custom_call.1} parent=133 // loop_body
                %v583 = vld [vmem:[%s581] sm:%s574]
                %584 = vst [vmem:[%s582] sm:%s574] %v583
                %v585 = vld [vmem:[%s581 + $0x4] sm:%s574]
                %586 = vst [vmem:[%s582 + $0xc] sm:%s574] %v585
                %v587 = vld [vmem:[%s581 + $0x8] sm:%s574]
                %588 = vst [vmem:[%s582 + $0x18] sm:%s574] %v587
                %v589 = vld [vmem:[%s581 + $0xc] sm:%s574]
                %590 = vst [vmem:[%s582 + $0x24] sm:%s574] %v589
                %v591 = vld [vmem:[%s581 + $0x10] sm:%s574]
                %592 = vst [vmem:[%s582 + $0x30] sm:%s574] %v591
                %v593 = vld [vmem:[%s581 + $0x14] sm:%s574]
                %594 = vst [vmem:[%s582 + $0x3c] sm:%s574] %v593
                %v595 = vld [vmem:[%s581 + $0x18] sm:%s574]
                %596 = vst [vmem:[%s582 + $0x48] sm:%s574] %v595
                %v597 = vld [vmem:[%s581 + $0x1c] sm:%s574]
                %598 = vst [vmem:[%s582 + $0x54] sm:%s574] %v597
              $region139: #{tpu_custom_call.1} parent=133 // loop_footer
                %s580 = sadd.s32 1, %s576
              $region140: #{tpu_custom_call.1} parent=133 // loop_footer_branch
                %575 = sbr.rel target = $region136
              $region141: #{tpu_custom_call.1} parent=133 // loop_exit
                _
            $region134: #{tpu_custom_call.1} parent=125 // pred_fallthru
              _
          $region126: #{tpu_custom_call.1} parent=121 // pred_fallthru
            _
          %635 = vnop
        $region122: #{tpu_custom_call.1} parent=101 // pred_fallthru
          _
      $region102: #{tpu_custom_call.1} parent=5 // pred_fallthru
        _
      %p636 = scmp.le.s32.totalorder 2, %s8
      // Predicated region
      $region160: #{tpu_custom_call.1} parent=5 // pred_check
        %p637 = pneg %p636
      $region161: #{tpu_custom_call.1} parent=5 // pred_check_branch
        %639 = sbr.rel (%p637) target = $region163
      $region162: #{tpu_custom_call.1} parent=5 // pred_region
        %s640 = ssub.s32 %s8, 2
        // Predicated region
        $region164: #{tpu_custom_call.1} parent=162 // pred_check
          %p641 = pneg %p114
        $region165: #{tpu_custom_call.1} parent=162 // pred_check_branch
          %643 = sbr.rel (%p641) target = $region167
        $region166: #{tpu_custom_call.1} parent=162 // pred_region
          %s644 = sand.u32 %s99, 1
          %s645 = sand.u32 %s99, 1
          %s646 = smul.addr %s645, 32
          %s647 = scalar_lea.vmem [#allocation5], %s646
        $region167: #{tpu_custom_call.1} parent=162 // pred_fallthru
          _
      $region163: #{tpu_custom_call.1} parent=5 // pred_fallthru
        _
    $region6: #{tpu_custom_call.1} parent=1 // loop_footer
      %s12 = sadd.s32 1, %s8
    $region7: #{tpu_custom_call.1} parent=1 // loop_footer_branch
      %7 = sbr.rel target = $region3
    $region8: #{tpu_custom_call.1} parent=1 // loop_exit
      _

</llo_original>
